<compile_context>
chip_gen: v5e
topology: v5e:2x2
jax: 0.10.0
libtpu: 0.0.40
codegen_flags: <defaults>
</compile_context>

<pallas_src>
import numpy as np
import jax
import jax.numpy as jnp
from jax import lax
from jax.experimental import pallas as pl
from jax.experimental.pallas import tpu as pltpu


def _round_up(x, m):
    return ((x + m - 1) // m) * m


def _bn_affine(bn, time, eps):
    """Per-channel (scale, shift) of Recurrent_BatchNorm3d at timestep `time`.
    `time` may be a Python int or a traced int32 scalar (clamped like torch)."""
    t_max = bn["mean"].shape[0]
    t = jnp.clip(jnp.asarray(time, jnp.int32), 0, t_max - 1)
    mean_t = jnp.take(bn["mean"], t, axis=0)
    var_t = jnp.take(bn["var"], t, axis=0)
    scale = bn["gamma"] * lax.rsqrt(var_t + eps)
    shift = bn["beta"] - mean_t * scale
    return scale, shift


def make_bn_fcconv3d_kernel(N, tile_dhw, C_out, flat_out):
    def kernel(fc7_ref, wfc_ref, patches_ref, wpack_ref, scale1_ref, shift_ref,
               out_ref):
        # FC branch: (N, fan_in) @ (fan_in, tile_dhw*C_out) -> f32 accumulation.
        fc = jnp.dot(fc7_ref[...], wfc_ref[...],
                     preferred_element_type=jnp.float32)      # (N, tile_dhw*C_out)
        # Conv branch (im2col): (N*tile_dhw, K_pad) @ (K_pad, C_out).
        conv = jnp.dot(patches_ref[...].reshape(N * tile_dhw, -1), wpack_ref[...],
                       preferred_element_type=jnp.float32
                       ).reshape(N, tile_dhw, C_out)
        scale1 = scale1_ref[...][:, None, :]                  # (1, 1, C_out) f32
        shift = shift_ref[...][:, None, :]                    # (1, 1, C_out) f32
        res = fc.reshape(N, tile_dhw, C_out) * scale1 + conv + shift
        if flat_out:
            # lane-dense store (last dim = tile_dhw*C_out >= 128)
            out_ref[...] = res.reshape(N, tile_dhw * C_out)
        else:
            # C_out is a multiple of 128: already lane-dense in split layout
            out_ref[...] = res
    return kernel


def prepare_params(w_fc, w_conv, bias, bn1, bn2, output_shape, fan_in):
    """Time-independent layout work; run once at init, reuse every forward."""
    C_out, D, H, W = output_shape[1:]
    C_in = w_conv.shape[1]
    K = w_conv.shape[2]
    DHW = D * H * W
    KC = K * K * K * C_in
    K_pad = _round_up(KC, 256)          # 256-aligned contraction (v6e/v7x MXU)

    # FC weight -> (fan_in, DHW*C_out), columns ordered (d, h, w, c); cast to
    # bf16 once here.  No BN scale folded -> no per-call re-materialisation of
    # the only large weight.
    wfc = (w_fc.reshape(C_out, D, H, W, fan_in)
           .transpose(1, 2, 3, 0, 4)
           .reshape(DHW * C_out, fan_in).T
           .astype(jnp.bfloat16))

    # Conv weight -> (KC, C_out), rows ordered (kd, kh, kw, ci); kept f32 so the
    # small time-dependent BN2 scale can be folded in f32 per call (cast last).
    wconv_kc = w_conv.transpose(2, 3, 4, 1, 0).reshape(KC, C_out).astype(jnp.float32)

    meta = dict(C_in=C_in, C_out=C_out, D=D, H=H, W=W, K=K, P=(K - 1) // 2,
                DHW=DHW, KC=KC, K_pad=K_pad, fan_in=fan_in)
    return dict(wfc=wfc, wconv_kc=wconv_kc, bias=bias.reshape(-1),
                bn1=bn1, bn2=bn2, meta=meta)


def _choose_tile_dhw(N, fan_in, C_out, DHW, K_pad,
                     vmem_budget_bytes=40 << 20, target_steps=4):
    """Largest DHW tile whose double-buffered VMEM footprint fits the budget,
    preferring >= target_steps grid steps so streaming is pipelined.
    The (8, 128) block constraints are enforced here."""
    def est(d):
        wfc_t = fan_in * d * C_out * 2            # bf16
        pat_t = N * d * K_pad * 2                 # bf16
        out_t = N * d * C_out * 4                 # f32
        resident = (N * fan_in + K_pad * C_out) * 2 + 2 * C_out * 4
        return 2 * (wfc_t + pat_t + out_t + resident)   # double-buffered

    valid = [d for d in range(1, DHW + 1)
             if DHW % d == 0
             and (d % 8 == 0 or d == DHW)
             and ((d * C_out) % 128 == 0 or d == DHW)]
    fits = [d for d in valid if est(d) <= vmem_budget_bytes] or valid[:1]
    pref = [d for d in fits if DHW // d >= target_steps]
    d = max(pref) if pref else max(fits)
    return d, est(d)


def bn_fcconv3d_forward(params, fc7, h, time, eps=1e-5):
    """fc7: (N, fan_in) f32; h: (N, C_in, D, H, W) f32.  Returns (N, C_out, D, H, W) f32."""
    m = params["meta"]
    C_out, D, H, W = m["C_out"], m["D"], m["H"], m["W"]
    K, P = m["K"], m["P"]
    DHW, KC, K_pad, fan_in = m["DHW"], m["KC"], m["K_pad"], m["fan_in"]
    N = fc7.shape[0]

    # ---- time-dependent BN folding (all in f32; bf16 cast last) ----
    scale1, shift1 = _bn_affine(params["bn1"], time, eps)     # FC branch
    scale2, shift2 = _bn_affine(params["bn2"], time, eps)     # conv branch
    wpack = jnp.concatenate(
        [params["wconv_kc"] * scale2[None, :],
         jnp.zeros((K_pad - KC, C_out), jnp.float32)], axis=0).astype(jnp.bfloat16)
    scale1_in = scale1.reshape(1, C_out).astype(jnp.float32)
    shift_in = (shift1 + shift2 + params["bias"]).reshape(1, C_out).astype(jnp.float32)

    # ---- im2col patch tensor (N, DHW, K_pad), bf16, columns (kd, kh, kw, ci) ----
    h_cl = h.transpose(0, 2, 3, 4, 1).astype(jnp.bfloat16)    # (N, D, H, W, C_in)
    h_p = jnp.pad(h_cl, ((0, 0), (P, P), (P, P), (P, P), (0, 0)))
    taps = [h_p[:, kd:kd + D, kh:kh + H, kw:kw + W, :]
            for kd in range(K) for kh in range(K) for kw in range(K)]
    patches = jnp.stack(taps, axis=4).reshape(N, DHW, KC)
    patches = jnp.concatenate(
        [patches, jnp.zeros((N, DHW, K_pad - KC), jnp.bfloat16)], axis=2)

    fc7_b = fc7.astype(jnp.bfloat16)
    wfc = params["wfc"]

    tile_dhw, vmem_est = _choose_tile_dhw(N, fan_in, C_out, DHW, K_pad)
    n_tiles = DHW // tile_dhw
    flat_out = (C_out % 128) != 0          # lane-dense store when C_out is small

    if flat_out:
        out_shape = jax.ShapeDtypeStruct((N, DHW * C_out), jnp.float32)
        out_spec = pl.BlockSpec((N, tile_dhw * C_out), lambda j: (0, j))
    else:
        out_shape = jax.ShapeDtypeStruct((N, DHW, C_out), jnp.float32)
        out_spec = pl.BlockSpec((N, tile_dhw, C_out), lambda j: (0, j, 0))

    flops = 2 * N * DHW * C_out * (fan_in + K_pad) + 4 * N * DHW * C_out
    bytes_accessed = ((fc7_b.size + wfc.size + patches.size + wpack.size) * 2
                      + (scale1_in.size + shift_in.size) * 4
                      + N * DHW * C_out * 4)

    kernel = make_bn_fcconv3d_kernel(N, tile_dhw, C_out, flat_out)
    out = pl.pallas_call(
        kernel,
        out_shape=out_shape,
        grid_spec=pltpu.PrefetchScalarGridSpec(
            num_scalar_prefetch=0,
            grid=(n_tiles,),                 # tile the DHW axis -> pipelined DMAs
            in_specs=[
                pl.BlockSpec((N, fan_in), lambda j: (0, 0)),                 # fc7 (resident)
                pl.BlockSpec((fan_in, tile_dhw * C_out), lambda j: (0, j)),  # wfc column tile
                pl.BlockSpec((N, tile_dhw, K_pad), lambda j: (0, j, 0)),     # im2col rows
                pl.BlockSpec((K_pad, C_out), lambda j: (0, 0)),              # wpack (resident)
                pl.BlockSpec((1, C_out), lambda j: (0, 0)),                  # BN1 scale
                pl.BlockSpec((1, C_out), lambda j: (0, 0)),                  # combined shift
            ],
            out_specs=out_spec,
        ),
        compiler_params=pltpu.CompilerParams(
            dimension_semantics=("parallel",),   # v7x: split tiles across 2 TCs
            vmem_limit_bytes=int(min(max(vmem_est + (4 << 20), 16 << 20), 48 << 20)),
        ),
        cost_estimate=pl.CostEstimate(
            flops=int(flops), transcendentals=0,
            bytes_accessed=int(bytes_accessed)),
    )(fc7_b, wfc, patches, wpack, scale1_in, shift_in)

    # back to NCDHW (flat and split layouts share the same (N,D,H,W,C) order)
    return out.reshape(N, D, H, W, C_out).transpose(0, 4, 1, 2, 3)


def reference_forward(fc7, h, w_fc, w_conv, bias, bn1, bn2, time,
                      output_shape, eps=1e-5):
    N = fc7.shape[0]
    C_out, D, H, W = output_shape[1:]
    K = w_conv.shape[2]
    P = (K - 1) // 2
    s1, b1 = _bn_affine(bn1, time, eps)
    s2, b2 = _bn_affine(bn2, time, eps)
    s1 = s1[None, :, None, None, None]; b1 = b1[None, :, None, None, None]
    s2 = s2[None, :, None, None, None]; b2 = b2[None, :, None, None, None]
    fc = (fc7 @ w_fc.T).reshape(N, C_out, D, H, W)
    conv = lax.conv_general_dilated(
        h, w_conv, window_strides=(1, 1, 1), padding=[(P, P)] * 3,
        dimension_numbers=("NCDHW", "OIDHW", "NCDHW"))
    return (fc * s1 + b1) + (conv * s2 + b2) + bias.reshape(1, C_out, 1, 1, 1)


if __name__ == "__main__":
    # Small shapes consistent with the module.  The module applies BN with
    # num_features = filter_shape[0] to C_out-channel tensors, so it is only
    # shape-consistent when C_in == C_out (as in 3D-R2N2's GRU hidden state).
    N, fan_in = 2, 32
    C_in = C_out = 8
    K = 3
    D = H = W = 4
    T_max, time = 3, 1
    eps = 1e-5
    output_shape = (N, C_out, D, H, W)

    key = jax.random.PRNGKey(0)
    ks = jax.random.split(key, 8)
    fc7 = jax.random.normal(ks[0], (N, fan_in), dtype=jnp.float32)
    h = jax.random.normal(ks[1], (N, C_in, D, H, W), dtype=jnp.float32)
    w_fc = jax.random.normal(ks[2], (C_out * D * H * W, fan_in), dtype=jnp.float32) * 0.05
    w_conv = jax.random.normal(ks[3], (C_out, C_in, K, K, K), dtype=jnp.float32) * 0.05
    bias = jnp.full((C_out,), 0.1, dtype=jnp.float32)          # module self.bias init

    # Recurrent_BatchNorm3d: affine init weight=0.1 / bias=0; per-timestep
    # running stats (made non-trivial to exercise the time-indexed folding).
    def make_bn(k):
        k1, k2 = jax.random.split(k)
        return dict(
            gamma=jnp.full((C_out,), 0.1, dtype=jnp.float32),
            beta=jnp.zeros((C_out,), dtype=jnp.float32),
            mean=0.1 * jax.random.normal(k1, (T_max, C_out), dtype=jnp.float32),
            var=1.0 + 0.2 * jax.random.uniform(k2, (T_max, C_out), dtype=jnp.float32),
        )

    bn1 = make_bn(ks[4])
    bn2 = make_bn(ks[5])

    params = prepare_params(w_fc, w_conv, bias, bn1, bn2, output_shape, fan_in)
    out = bn_fcconv3d_forward(params, fc7, h, time, eps)
    out = jax.block_until_ready(out)

    ref = reference_forward(fc7, h, w_fc, w_conv, bias, bn1, bn2, time,
                            output_shape, eps)
    assert out.shape == (N, C_out, D, H, W), out.shape
    # bf16 inputs with f32 accumulation -> relaxed tolerances vs f32 reference.
    np.testing.assert_allclose(np.asarray(out), np.asarray(ref),
                               rtol=5e-2, atol=5e-3)
    print("KERNEL_OK")
</pallas_src>

<mosaic_0001>
module attributes {stable_mosaic.version = 11 : i64} {
  func.func @kernel(%arg0: i32, %arg1: memref<2x32xbf16, #tpu.memory_space<vmem>>, %arg2: memref<32x128xbf16, #tpu.memory_space<vmem>>, %arg3: memref<2x16x256xbf16, #tpu.memory_space<vmem>>, %arg4: memref<256x8xbf16, #tpu.memory_space<vmem>>, %arg5: memref<1x8xf32, #tpu.memory_space<vmem>>, %arg6: memref<1x8xf32, #tpu.memory_space<vmem>>, %arg7: memref<2x128xf32, #tpu.memory_space<vmem>>) attributes {dimension_semantics = [#tpu.dimension_semantics<parallel>], iteration_bounds = array<i64: 4>, scalar_prefetch = 0 : i64, scratch_operands = 0 : i64, tpu.core_type = #tpu.core_type<tc>, window_params = [{pipeline_mode = #tpu.pipeline_mode<synchronous>, transform_indices = @transform_0, window_bounds = array<i64: 2, 32>}, {transform_indices = @transform_1, window_bounds = array<i64: 32, 128>}, {transform_indices = @transform_2, window_bounds = array<i64: 2, 16, 256>}, {pipeline_mode = #tpu.pipeline_mode<synchronous>, transform_indices = @transform_3, window_bounds = array<i64: 256, 8>}, {pipeline_mode = #tpu.pipeline_mode<synchronous>, transform_indices = @transform_4, window_bounds = array<i64: 1, 8>}, {pipeline_mode = #tpu.pipeline_mode<synchronous>, transform_indices = @transform_5, window_bounds = array<i64: 1, 8>}, {transform_indices = @transform_6, window_bounds = array<i64: 2, 128>}]} {
    %c0 = arith.constant 0 : index
    %c0_0 = arith.constant 0 : index
    %0 = vector.load %arg1[%c0, %c0_0] : memref<2x32xbf16, #tpu.memory_space<vmem>>, vector<2x32xbf16>
    %c0_1 = arith.constant 0 : index
    %c0_2 = arith.constant 0 : index
    %1 = vector.load %arg2[%c0_1, %c0_2] : memref<32x128xbf16, #tpu.memory_space<vmem>>, vector<32x128xbf16>
    %cst = arith.constant dense<0.000000e+00> : vector<2x128xf32>
    %2 = tpu.matmul %0, %1, %cst {dimension_numbers = #tpu.dot_dimension_numbers<[1], [0], [0], [1], [0, 0, 1, 1], [], []>} : vector<2x32xbf16>, vector<32x128xbf16>, vector<2x128xf32> -> vector<2x128xf32>
    %c0_3 = arith.constant 0 : index
    %c0_4 = arith.constant 0 : index
    %c0_5 = arith.constant 0 : index
    %3 = vector.load %arg3[%c0_3, %c0_4, %c0_5] : memref<2x16x256xbf16, #tpu.memory_space<vmem>>, vector<2x16x256xbf16>
    %4 = vector.shape_cast %3 : vector<2x16x256xbf16> to vector<32x256xbf16>
    %c0_6 = arith.constant 0 : index
    %c0_7 = arith.constant 0 : index
    %5 = vector.load %arg4[%c0_6, %c0_7] : memref<256x8xbf16, #tpu.memory_space<vmem>>, vector<256x8xbf16>
    %cst_8 = arith.constant dense<0.000000e+00> : vector<32x8xf32>
    %6 = tpu.matmul %4, %5, %cst_8 {dimension_numbers = #tpu.dot_dimension_numbers<[1], [0], [0], [1], [0, 0, 1, 1], [], []>} : vector<32x256xbf16>, vector<256x8xbf16>, vector<32x8xf32> -> vector<32x8xf32>
    %7 = vector.shape_cast %6 : vector<32x8xf32> to vector<2x16x8xf32>
    %c0_9 = arith.constant 0 : index
    %c0_10 = arith.constant 0 : index
    %8 = vector.load %arg5[%c0_9, %c0_10] : memref<1x8xf32, #tpu.memory_space<vmem>>, vector<1x8xf32>
    %9 = vector.shape_cast %8 : vector<1x8xf32> to vector<1x1x8xf32>
    %c0_11 = arith.constant 0 : index
    %c0_12 = arith.constant 0 : index
    %10 = vector.load %arg6[%c0_11, %c0_12] : memref<1x8xf32, #tpu.memory_space<vmem>>, vector<1x8xf32>
    %11 = vector.shape_cast %10 : vector<1x8xf32> to vector<1x1x8xf32>
    %12 = vector.shape_cast %2 : vector<2x128xf32> to vector<2x16x8xf32>
    %13 = vector.broadcast %9 : vector<1x1x8xf32> to vector<2x16x8xf32>
    %14 = arith.mulf %12, %13 : vector<2x16x8xf32>
    %15 = arith.addf %14, %7 : vector<2x16x8xf32>
    %16 = vector.broadcast %11 : vector<1x1x8xf32> to vector<2x16x8xf32>
    %17 = arith.addf %15, %16 : vector<2x16x8xf32>
    %18 = vector.shape_cast %17 : vector<2x16x8xf32> to vector<2x128xf32>
    %c0_13 = arith.constant 0 : index
    %c0_14 = arith.constant 0 : index
    %19 = vector.load %arg7[%c0_13, %c0_14] : memref<2x128xf32, #tpu.memory_space<vmem>>, vector<2x128xf32>
    tpu.vector_store %arg7[%c0_13, %c0_14], %18 {strides = array<i32>} : memref<2x128xf32, #tpu.memory_space<vmem>>, vector<2x128xf32>,
    return
  }
  func.func @transform_0(%arg0: i32) -> (i32, i32) {
    %c0_i32 = arith.constant 0 : i32
    %c0_i32_0 = arith.constant 0 : i32
    %c0_i32_1 = arith.constant 0 : i32
    return %c0_i32, %c0_i32_0 : i32, i32
  }
  func.func @transform_1(%arg0: i32) -> (i32, i32) {
    %c0_i32 = arith.constant 0 : i32
    %c0_i32_0 = arith.constant 0 : i32
    return %c0_i32, %arg0 : i32, i32
  }
  func.func @transform_2(%arg0: i32) -> (i32, i32, i32) {
    %c0_i32 = arith.constant 0 : i32
    %c0_i32_0 = arith.constant 0 : i32
    %c0_i32_1 = arith.constant 0 : i32
    return %c0_i32, %arg0, %c0_i32_0 : i32, i32, i32
  }
  func.func @transform_3(%arg0: i32) -> (i32, i32) {
    %c0_i32 = arith.constant 0 : i32
    %c0_i32_0 = arith.constant 0 : i32
    %c0_i32_1 = arith.constant 0 : i32
    return %c0_i32, %c0_i32_0 : i32, i32
  }
  func.func @transform_4(%arg0: i32) -> (i32, i32) {
    %c0_i32 = arith.constant 0 : i32
    %c0_i32_0 = arith.constant 0 : i32
    %c0_i32_1 = arith.constant 0 : i32
    return %c0_i32, %c0_i32_0 : i32, i32
  }
  func.func @transform_5(%arg0: i32) -> (i32, i32) {
    %c0_i32 = arith.constant 0 : i32
    %c0_i32_0 = arith.constant 0 : i32
    %c0_i32_1 = arith.constant 0 : i32
    return %c0_i32, %c0_i32_0 : i32, i32
  }
  func.func @transform_6(%arg0: i32) -> (i32, i32) {
    %c0_i32 = arith.constant 0 : i32
    %c0_i32_0 = arith.constant 0 : i32
    return %c0_i32, %arg0 : i32, i32
  }
}

</mosaic_0001>

<llo_original>
// kernel: tpu_custom_call.1
$region0: #{tpu_custom_call.1}
  #allocation0 [shape = 'u32[]', space=smem, size = 0x4, offset = 0x4, fixed_abs, tag = 'smem constant byte address 0x4 - core index']
  #allocation1 [shape = 'u32[72,128]{1,0:T(1,128)}', space=vmem, size = 0x9000, scoped, tag = 'internal scratch']
  %s0 = inlined_call_operand.vmem [shape: bf16[2,32], index: 0, kind: input, shape index: {}]
  %s1 = inlined_call_operand.hbm [shape: bf16[32,512], index: 1, kind: input, shape index: {}]
  %s2 = inlined_call_operand.vmem [shape: bf16[2,64,256], index: 2, kind: input, shape index: {}]
  %s3 = inlined_call_operand.vmem [shape: bf16[256,8], index: 3, kind: input, shape index: {}]
  %s4 = inlined_call_operand.vmem [shape: f32[1,8], index: 4, kind: input, shape index: {}]
  %s5 = inlined_call_operand.vmem [shape: f32[1,8], index: 5, kind: input, shape index: {}]
  %s6 = inlined_call_operand.hbm [shape: f32[2,512], index: 6, kind: output, shape index: {}]
  %s7 = sld [smem:[#allocation0]]
  $region99: #{tpu_custom_call.1} parent=0
    _
  %s9 = ssub.s32 1, %s7
  %s10 = scalar_select 0, %s9, %s7
  $region1: #{tpu_custom_call.1} parent=0
    #allocation2 [shape = 'u8[16384]{0}', space=vmem, size = 0x4000, scoped, tag = 'input window, operand 1']
    #allocation3 [shape = 's32[2]{0}', space=sflag, size = 0x8, scoped, tag = 'scoped memory for tpu_custom_call.1']
    #allocation4 [shape = 's32[2]{0}', space=sflag, size = 0x8, scoped, tag = 'scoped memory for tpu_custom_call.1']
    #allocation5 [shape = 'u8[32768]{0}', space=vmem, size = 0x8000, scoped, tag = 'input window, operand 2']
    #allocation6 [shape = 'u8[2048]{0}', space=vmem, size = 0x800, scoped, tag = 'output window, operand 0']
    %11 = vsyncpa [#allocation3], 0
    %s12 = scalar_lea.sflag [#allocation3], 1
    %13 = vsyncpa %s12, 0
    %14 = vsyncpa [#allocation4], 0
    %s15 = scalar_lea.sflag [#allocation4], 1
    %16 = vsyncpa %s15, 0
    loop: start=0, step=1, limit=6
    $region2: #{tpu_custom_call.1} parent=1 // loop_pre_header
      _
    $region3: #{tpu_custom_call.1} parent=1 // loop_header
      %s18 = sphi 0, %s22
      %p19 = scmp.ge.s32.totalorder %s18, 6
      %s26 = sphi 0, %s26
      %s28 = sphi 0, %s26
      %s29 = sphi 0, %s28
      %s43 = sphi 0, %s29
      %s49 = sphi 0, %s51
      %s52 = sphi 0, %s49
      %s53 = sphi 0, %s52
      %s69 = sphi 0, %s53
      %s75 = sphi 0, %s77
      %s78 = sphi 0, %s75
      %s79 = sphi 0, %s78
      %s95 = sphi 0, %s79
      %s99 = sphi 0, %s99
      %s101 = sphi 0, %s99
      %s102 = sphi 0, %s101
      %s116 = sphi 0, %s102
      %s120 = sphi 0, %s120
      %s122 = sphi 0, %s120
      %s123 = sphi 0, %s122
      %s137 = sphi 0, %s123
      %s141 = sphi 0, %s141
      %s143 = sphi 0, %s141
      %s144 = sphi 0, %s143
      %s158 = sphi 0, %s144
      %s164 = sphi 0, %s166
      %s167 = sphi 0, %s164
      %s168 = sphi 0, %s167
      %s184 = sphi 0, %s168
    $region4: #{tpu_custom_call.1} parent=1 // loop_header_branch
      %21 = sbr.rel (%p19) target = $region8
    $region5: #{tpu_custom_call.1} parent=1 // loop_body
      %s23 = ssub.s32 %s18, 1
      %s24 = ssub.s32 %s18, 2
      %s25 = sadd.s32 %s18, 1
      %s27 = sadd.s32 %s26, 1
      %p30 = scmp.eq.s32.totalorder %s18, 3
      %p31 = scmp.ne.s32.totalorder %s26, %s28
      %p32 = scmp.eq.s32.totalorder %s18, 0
      %p33 = por %p31, %p32
      %p34 = scmp.ne.s32.totalorder %s26, %s28
      %p35 = scmp.eq.s32.totalorder %s23, 3
      %p36 = por %p34, %p35
      %p37 = scmp.ne.s32.totalorder %s28, %s29
      %p38 = scmp.eq.s32.totalorder %s23, 0
      %p39 = por %p37, %p38
      %p40 = scmp.ne.s32.totalorder %s28, %s29
      %p41 = scmp.eq.s32.totalorder %s24, 3
      %p42 = por %p40, %p41
      %p44 = scmp.ne.s32.totalorder %s29, %s43
      %p45 = scmp.eq.s32.totalorder %s24, 0
      %p46 = por %p44, %p45
      %s47 = ssub.s32 %s18, %s25
      %p48 = scmp.eq.s32.totalorder %s47, 0
      %s50 = sadd.s32 %s49, 1
      %s51 = scalar_select %p48, %s49, %s50
      %p54 = pneg %p48
      %p55 = scmp.eq.s32.totalorder %s18, 3
      %p56 = por %p54, %p55
      %p57 = scmp.ne.s32.totalorder %s49, %s52
      %p58 = scmp.eq.s32.totalorder %s18, 0
      %p59 = por %p57, %p58
      %p60 = scmp.ne.s32.totalorder %s49, %s52
      %p61 = scmp.eq.s32.totalorder %s23, 3
      %p62 = por %p60, %p61
      %p63 = scmp.ne.s32.totalorder %s52, %s53
      %p64 = scmp.eq.s32.totalorder %s23, 0
      %p65 = por %p63, %p64
      %p66 = scmp.ne.s32.totalorder %s52, %s53
      %p67 = scmp.eq.s32.totalorder %s24, 3
      %p68 = por %p66, %p67
      %p70 = scmp.ne.s32.totalorder %s53, %s69
      %p71 = scmp.eq.s32.totalorder %s24, 0
      %p72 = por %p70, %p71
      %s73 = ssub.s32 %s18, %s25
      %p74 = scmp.eq.s32.totalorder %s73, 0
      %s76 = sadd.s32 %s75, 1
      %s77 = scalar_select %p74, %s75, %s76
      %p80 = pneg %p74
      %p81 = scmp.eq.s32.totalorder %s18, 3
      %p82 = por %p80, %p81
      %p83 = scmp.ne.s32.totalorder %s75, %s78
      %p84 = scmp.eq.s32.totalorder %s18, 0
      %p85 = por %p83, %p84
      %p86 = scmp.ne.s32.totalorder %s75, %s78
      %p87 = scmp.eq.s32.totalorder %s23, 3
      %p88 = por %p86, %p87
      %p89 = scmp.ne.s32.totalorder %s78, %s79
      %p90 = scmp.eq.s32.totalorder %s23, 0
      %p91 = por %p89, %p90
      %p92 = scmp.ne.s32.totalorder %s78, %s79
      %p93 = scmp.eq.s32.totalorder %s24, 3
      %p94 = por %p92, %p93
      %p96 = scmp.ne.s32.totalorder %s79, %s95
      %p97 = scmp.eq.s32.totalorder %s24, 0
      %p98 = por %p96, %p97
      %s100 = sadd.s32 %s99, 1
      %p103 = scmp.eq.s32.totalorder %s18, 3
      %p104 = scmp.ne.s32.totalorder %s99, %s101
      %p105 = scmp.eq.s32.totalorder %s18, 0
      %p106 = por %p104, %p105
      %p107 = scmp.ne.s32.totalorder %s99, %s101
      %p108 = scmp.eq.s32.totalorder %s23, 3
      %p109 = por %p107, %p108
      %p110 = scmp.ne.s32.totalorder %s101, %s102
      %p111 = scmp.eq.s32.totalorder %s23, 0
      %p112 = por %p110, %p111
      %p113 = scmp.ne.s32.totalorder %s101, %s102
      %p114 = scmp.eq.s32.totalorder %s24, 3
      %p115 = por %p113, %p114
      %p117 = scmp.ne.s32.totalorder %s102, %s116
      %p118 = scmp.eq.s32.totalorder %s24, 0
      %p119 = por %p117, %p118
      %s121 = sadd.s32 %s120, 1
      %p124 = scmp.eq.s32.totalorder %s18, 3
      %p125 = scmp.ne.s32.totalorder %s120, %s122
      %p126 = scmp.eq.s32.totalorder %s18, 0
      %p127 = por %p125, %p126
      %p128 = scmp.ne.s32.totalorder %s120, %s122
      %p129 = scmp.eq.s32.totalorder %s23, 3
      %p130 = por %p128, %p129
      %p131 = scmp.ne.s32.totalorder %s122, %s123
      %p132 = scmp.eq.s32.totalorder %s23, 0
      %p133 = por %p131, %p132
      %p134 = scmp.ne.s32.totalorder %s122, %s123
      %p135 = scmp.eq.s32.totalorder %s24, 3
      %p136 = por %p134, %p135
      %p138 = scmp.ne.s32.totalorder %s123, %s137
      %p139 = scmp.eq.s32.totalorder %s24, 0
      %p140 = por %p138, %p139
      %s142 = sadd.s32 %s141, 1
      %p145 = scmp.eq.s32.totalorder %s18, 3
      %p146 = scmp.ne.s32.totalorder %s141, %s143
      %p147 = scmp.eq.s32.totalorder %s18, 0
      %p148 = por %p146, %p147
      %p149 = scmp.ne.s32.totalorder %s141, %s143
      %p150 = scmp.eq.s32.totalorder %s23, 3
      %p151 = por %p149, %p150
      %p152 = scmp.ne.s32.totalorder %s143, %s144
      %p153 = scmp.eq.s32.totalorder %s23, 0
      %p154 = por %p152, %p153
      %p155 = scmp.ne.s32.totalorder %s143, %s144
      %p156 = scmp.eq.s32.totalorder %s24, 3
      %p157 = por %p155, %p156
      %p159 = scmp.ne.s32.totalorder %s144, %s158
      %p160 = scmp.eq.s32.totalorder %s24, 0
      %p161 = por %p159, %p160
      %s162 = ssub.s32 %s18, %s25
      %p163 = scmp.eq.s32.totalorder %s162, 0
      %s165 = sadd.s32 %s164, 1
      %s166 = scalar_select %p163, %s164, %s165
      %p169 = pneg %p163
      %p170 = scmp.eq.s32.totalorder %s18, 3
      %p171 = por %p169, %p170
      %p172 = scmp.ne.s32.totalorder %s164, %s167
      %p173 = scmp.eq.s32.totalorder %s18, 0
      %p174 = por %p172, %p173
      %p175 = scmp.ne.s32.totalorder %s164, %s167
      %p176 = scmp.eq.s32.totalorder %s23, 3
      %p177 = por %p175, %p176
      %p178 = scmp.ne.s32.totalorder %s167, %s168
      %p179 = scmp.eq.s32.totalorder %s23, 0
      %p180 = por %p178, %p179
      %p181 = scmp.ne.s32.totalorder %s167, %s168
      %p182 = scmp.eq.s32.totalorder %s24, 3
      %p183 = por %p181, %p182
      %p185 = scmp.ne.s32.totalorder %s168, %s184
      %p186 = scmp.eq.s32.totalorder %s24, 0
      %p187 = por %p185, %p186
      %p188 = scmp.le.s32.totalorder 1, %s18
      %p189 = scmp.lt.s32.totalorder %s18, 5
      %p190 = pnand %p188, %p189
      %p191 = pneg %p190
      // Predicated region
      $region9: #{tpu_custom_call.1} parent=5 // pred_check
        _
      $region10: #{tpu_custom_call.1} parent=5 // pred_check_branch
        %193 = sbr.rel (%p190) target = $region12
      $region11: #{tpu_custom_call.1} parent=5 // pred_region
        %s194 = ssub.s32 %s18, 1
        // Predicated region
        $region13: #{tpu_custom_call.1} parent=11 // pred_check
          %p195 = pneg %p39
        $region14: #{tpu_custom_call.1} parent=11 // pred_check_branch
          %197 = sbr.rel (%p195) target = $region16
        $region15: #{tpu_custom_call.1} parent=11 // pred_region
          _
        $region16: #{tpu_custom_call.1} parent=11 // pred_fallthru
          _
        // Predicated region
        $region17: #{tpu_custom_call.1} parent=11 // pred_check
          %p198 = pneg %p112
        $region18: #{tpu_custom_call.1} parent=11 // pred_check_branch
          %200 = sbr.rel (%p198) target = $region20
        $region19: #{tpu_custom_call.1} parent=11 // pred_region
          _
        $region20: #{tpu_custom_call.1} parent=11 // pred_fallthru
          _
        // Predicated region
        $region21: #{tpu_custom_call.1} parent=11 // pred_check
          %p201 = pneg %p133
        $region22: #{tpu_custom_call.1} parent=11 // pred_check_branch
          %203 = sbr.rel (%p201) target = $region24
        $region23: #{tpu_custom_call.1} parent=11 // pred_region
          _
        $region24: #{tpu_custom_call.1} parent=11 // pred_fallthru
          _
        // Predicated region
        $region25: #{tpu_custom_call.1} parent=11 // pred_check
          %p204 = pneg %p154
        $region26: #{tpu_custom_call.1} parent=11 // pred_check_branch
          %206 = sbr.rel (%p204) target = $region28
        $region27: #{tpu_custom_call.1} parent=11 // pred_region
          _
        $region28: #{tpu_custom_call.1} parent=11 // pred_fallthru
          _
      $region12: #{tpu_custom_call.1} parent=5 // pred_fallthru
        _
      %p207 = scmp.lt.s32.totalorder %s18, 4
      // Predicated region
      $region29: #{tpu_custom_call.1} parent=5 // pred_check
        %p208 = pneg %p207
      $region30: #{tpu_custom_call.1} parent=5 // pred_check_branch
        %210 = sbr.rel (%p208) target = $region32
      $region31: #{tpu_custom_call.1} parent=5 // pred_region
        // Predicated region
        $region33: #{tpu_custom_call.1} parent=31 // pred_check
          %p211 = pneg %p59
        $region34: #{tpu_custom_call.1} parent=31 // pred_check_branch
          %213 = sbr.rel (%p211) target = $region36
        $region35: #{tpu_custom_call.1} parent=31 // pred_region
          %s214 = sand.u32 %s49, 1
          %s215 = scalar_lea.sflag [#allocation3], %s214
          %s216 = sand.u32 %s49, 1
          %s217 = smul.addr %s216, 16
          %s218 = scalar_lea.vmem [#allocation2], %s217
          %220 = vsyncadd %s215, 0
          %s221 = smul.addr %s18, 4
          %s222 = scalar_lea.hbm %s1, %s221
          %s223 = sshll.u32 %s222, 4
          %s224 = int_to_ptr.hbm [resolvable:$true] %s223
          %s225 = sshll.u32 %s218, 4
          %s226 = int_to_ptr.vmem [resolvable:$true] %s225
          %231 = dma.hbm_to_vmem [thread:$0]  %s224, 256, %s226, %s215, 256, 64, 4
        $region36: #{tpu_custom_call.1} parent=31 // pred_fallthru
          _
        // Predicated region
        $region37: #{tpu_custom_call.1} parent=31 // pred_check
          %p232 = pneg %p85
        $region38: #{tpu_custom_call.1} parent=31 // pred_check_branch
          %234 = sbr.rel (%p232) target = $region40
        $region39: #{tpu_custom_call.1} parent=31 // pred_region
          %s235 = sand.u32 %s75, 1
          %s236 = sand.u32 %s75, 1
          %s237 = smul.addr %s236, 32
          %s238 = scalar_lea.vmem [#allocation5], %s237
          %s239 = smul.u32 2, %s18
          %s240 = smul.addr %s239, 2
          %s241 = smul.addr %s240, 4
          %s242 = scalar_lea.vmem %s2, %s241
          // Predicated region
          $region41: #{tpu_custom_call.1} parent=39 // pred_check
            _
          $region42: #{tpu_custom_call.1} parent=39 // pred_check_branch
            %244 = sbr.rel (0) target = $region44
          $region43: #{tpu_custom_call.1} parent=39 // pred_region
            // Predicated region
            $region45: #{tpu_custom_call.1} parent=43 // pred_check
              _
            $region46: #{tpu_custom_call.1} parent=43 // pred_check_branch
              %246 = sbr.rel (0) target = $region48
            $region47: #{tpu_custom_call.1} parent=43 // pred_region
              // Predicated region
              $region60: #{tpu_custom_call.1} parent=47 // pred_check
                _
              $region61: #{tpu_custom_call.1} parent=47 // pred_check_branch
                %268 = sbr.rel (0) target = $region63
              $region62: #{tpu_custom_call.1} parent=47 // pred_region
                loop: start=0, step=1, limit=1
                $region64: #{tpu_custom_call.1} parent=62 // loop_pre_header
                  _
                $region65: #{tpu_custom_call.1} parent=62 // loop_header
                  %s270 = sphi 0, %s274
                  %p271 = scmp.ge.s32.totalorder %s270, 1
                  %s275 = sphi %s242, %s242
                  %s276 = sphi %s238, %s238
                $region66: #{tpu_custom_call.1} parent=62 // loop_header_branch
                  %273 = sbr.rel (%p271) target = $region70
                $region67: #{tpu_custom_call.1} parent=62 // loop_body
                  %v277 = vld [vmem:[%s275] sm:$0xff]
                  %278 = vst [vmem:[%s276] sm:$0xff] %v277
                  %v279 = vld [vmem:[%s275 + $0x8] sm:$0xff]
                  %280 = vst [vmem:[%s276 + $0x8] sm:$0xff] %v279
                  %v281 = vld [vmem:[%s275 + $0x40] sm:$0xff]
                  %282 = vst [vmem:[%s276 + $0x10] sm:$0xff] %v281
                  %v283 = vld [vmem:[%s275 + $0x48] sm:$0xff]
                  %284 = vst [vmem:[%s276 + $0x18] sm:$0xff] %v283
                $region68: #{tpu_custom_call.1} parent=62 // loop_footer
                  %s274 = sadd.s32 1, %s270
                $region69: #{tpu_custom_call.1} parent=62 // loop_footer_branch
                  %269 = sbr.rel target = $region65
                $region70: #{tpu_custom_call.1} parent=62 // loop_exit
                  _
              $region63: #{tpu_custom_call.1} parent=47 // pred_fallthru
                _
              // Predicated region
              $region71: #{tpu_custom_call.1} parent=47 // pred_check
                _
              $region72: #{tpu_custom_call.1} parent=47 // pred_check_branch
                %286 = sbr.rel target = $region74
              $region73: #{tpu_custom_call.1} parent=47 // pred_region
                _
              $region74: #{tpu_custom_call.1} parent=47 // pred_fallthru
                _
            $region48: #{tpu_custom_call.1} parent=43 // pred_fallthru
              _
            // Predicated region
            $region49: #{tpu_custom_call.1} parent=43 // pred_check
              _
            $region50: #{tpu_custom_call.1} parent=43 // pred_check_branch
              %248 = sbr.rel target = $region52
            $region51: #{tpu_custom_call.1} parent=43 // pred_region
              %s250 = ssub.s32 256, 1
              loop: start=0, step=1, limit=1
              $region53: #{tpu_custom_call.1} parent=51 // loop_pre_header
                _
              $region54: #{tpu_custom_call.1} parent=51 // loop_header
                %s252 = sphi 0, %s256
                %p253 = scmp.ge.s32.totalorder %s252, 1
                %s257 = sphi %s242, %s242
                %s258 = sphi %s238, %s238
              $region55: #{tpu_custom_call.1} parent=51 // loop_header_branch
                %255 = sbr.rel (%p253) target = $region59
              $region56: #{tpu_custom_call.1} parent=51 // loop_body
                %v259 = vld [vmem:[%s257] sm:%s250]
                %260 = vst [vmem:[%s258] sm:%s250] %v259
                %v261 = vld [vmem:[%s257 + $0x8] sm:%s250]
                %262 = vst [vmem:[%s258 + $0x8] sm:%s250] %v261
                %v263 = vld [vmem:[%s257 + $0x40] sm:%s250]
                %264 = vst [vmem:[%s258 + $0x10] sm:%s250] %v263
                %v265 = vld [vmem:[%s257 + $0x48] sm:%s250]
                %266 = vst [vmem:[%s258 + $0x18] sm:%s250] %v265
              $region57: #{tpu_custom_call.1} parent=51 // loop_footer
                %s256 = sadd.s32 1, %s252
              $region58: #{tpu_custom_call.1} parent=51 // loop_footer_branch
                %251 = sbr.rel target = $region54
              $region59: #{tpu_custom_call.1} parent=51 // loop_exit
                _
            $region52: #{tpu_custom_call.1} parent=43 // pred_fallthru
              _
          $region44: #{tpu_custom_call.1} parent=39 // pred_fallthru
            _
          %287 = vnop
        $region40: #{tpu_custom_call.1} parent=31 // pred_fallthru
          _
      $region32: #{tpu_custom_call.1} parent=5 // pred_fallthru
        _
      %p288 = scmp.le.s32.totalorder 1, %s18
      %p289 = scmp.lt.s32.totalorder %s18, 5
      %p290 = pnand %p288, %p289
      %p291 = pneg %p290
      // Predicated region
      $region75: #{tpu_custom_call.1} parent=5 // pred_check
        _
      $region76: #{tpu_custom_call.1} parent=5 // pred_check_branch
        %293 = sbr.rel (%p290) target = $region78
      $region77: #{tpu_custom_call.1} parent=5 // pred_region
        %s294 = ssub.s32 %s18, 1
        %s295 = sand.u32 %s52, 1
        %s296 = scalar_lea.sflag [#allocation3], %s295
        %s297 = sand.u32 %s52, 1
        %s298 = smul.addr %s297, 16
        %s299 = scalar_lea.vmem [#allocation2], %s298
        // Predicated region
        $region79: #{tpu_custom_call.1} parent=77 // pred_check
          %p300 = pneg %p65
        $region80: #{tpu_custom_call.1} parent=77 // pred_check_branch
          %302 = sbr.rel (%p300) target = $region82
        $region81: #{tpu_custom_call.1} parent=77 // pred_region
          %304 = dma.done %s296, 256
        $region82: #{tpu_custom_call.1} parent=77 // pred_fallthru
          _
        %s305 = sand.u32 %s78, 1
        %s306 = sand.u32 %s78, 1
        %s307 = smul.addr %s306, 32
        %s308 = scalar_lea.vmem [#allocation5], %s307
        // Predicated region
        $region83: #{tpu_custom_call.1} parent=77 // pred_check
          %p309 = pneg %p91
        $region84: #{tpu_custom_call.1} parent=77 // pred_check_branch
          %311 = sbr.rel (%p309) target = $region86
        $region85: #{tpu_custom_call.1} parent=77 // pred_region
          _
        $region86: #{tpu_custom_call.1} parent=77 // pred_fallthru
          _
        %p312 = pneg %p39
        %p313 = pneg %p36
        %s314 = sand.u32 %s52, 1
        %s315 = scalar_lea.sflag [#allocation3], %s314
        %s316 = sand.u32 %s52, 1
        %s317 = smul.addr %s316, 16
        %s318 = scalar_lea.vmem [#allocation2], %s317
        %p319 = pneg %p65
        %p320 = pneg %p62
        %s321 = sand.u32 %s78, 1
        %s322 = sand.u32 %s78, 1
        %s323 = smul.addr %s322, 32
        %s324 = scalar_lea.vmem [#allocation5], %s323
        %p325 = pneg %p91
        %p326 = pneg %p88
        %p327 = pneg %p112
        %p328 = pneg %p109
        %p329 = pneg %p133
        %p330 = pneg %p130
        %p331 = pneg %p154
        %p332 = pneg %p151
        %p333 = pneg %p180
        %p334 = pneg %p177
        %s335 = sand.u32 %s167, 1
        %s336 = scalar_lea.sflag [#allocation4], %s335
        %s337 = sand.u32 %s167, 1
        %s338 = smul.addr %s337, 2
        %s339 = scalar_lea.vmem [#allocation6], %s338
        %s340 = smul.u32 2, %s23
        %v342 = vld [vmem:[%s0] sm:$0x1]
        %v343 = vld [vmem:[%s299] sm:$0xf]
        %v344 = vld [vmem:[%s299 + $0x4] sm:$0xf]
        %v345 = vld [vmem:[%s299 + $0x8] sm:$0xf]
        %v346 = vld [vmem:[%s299 + $0xc] sm:$0xf]
        %v351 = vunpack.c.l.b16 %v343
        %v352 = vunpack.c.l.b16 %v344
        %v353 = vunpack.c.l.b16 %v345
        %v354 = vunpack.c.l.b16 %v346
        %v355 = vpack.c.b16 %v352, %v351
        %v356 = vpack.c.b16 %v354, %v353
        %vm359 = vcmask 261120
        %v361 = vsel %vm359, %v342, 0
        %363 = vmatpush.bf16.msra.mxu0 0
        %364 = vmatpush.bf16.msra.mxu0 0
        %365 = vmatpush.bf16.msra.mxu0 0
        %366 = vmatpush.bf16.msra.mxu0 0
        %367 = vmatpush.bf16.msra.mxu0 0
        %368 = vmatpush.bf16.msra.mxu0 0
        %369 = vmatpush.bf16.msra.mxu0 %v356
        %370 = vmatpush.bf16.msra.mxu0 %v355
        %371 = vmatmul.bf16.gmra.mxu0 %v361
        %v372 = vpop.f32.mrf.mxu0
        %v373 = vadd.f32 0.0, %v372
        %v374 = vpop.f32.mrf.mxu0
        %375 = vdwg.mxu0
        %v376 = vld [vmem:[%s308] sm:$0xff]
        %v377 = vld [vmem:[%s308 + $0x8] sm:$0xff]
        %v378 = vld [vmem:[%s308 + $0x10] sm:$0xff]
        %v379 = vld [vmem:[%s308 + $0x18] sm:$0xff]
        %v380 = vld [vmem:[%s3] sm:$0xf]
        %v381 = vld [vmem:[%s3 + $0x4] sm:$0xf]
        %v382 = vld [vmem:[%s3 + $0x8] sm:$0xf]
        %v383 = vld [vmem:[%s3 + $0xc] sm:$0xf]
        %v384 = vld [vmem:[%s3 + $0x10] sm:$0xf]
        %v385 = vld [vmem:[%s3 + $0x14] sm:$0xf]
        %v386 = vld [vmem:[%s3 + $0x18] sm:$0xf]
        %v387 = vld [vmem:[%s3 + $0x1c] sm:$0xf]
        %v388 = vld [vmem:[%s3 + $0x20] sm:$0xf]
        %v389 = vld [vmem:[%s3 + $0x24] sm:$0xf]
        %v390 = vld [vmem:[%s3 + $0x28] sm:$0xf]
        %v391 = vld [vmem:[%s3 + $0x2c] sm:$0xf]
        %v392 = vld [vmem:[%s3 + $0x30] sm:$0xf]
        %v393 = vld [vmem:[%s3 + $0x34] sm:$0xf]
        %v394 = vld [vmem:[%s3 + $0x38] sm:$0xf]
        %v395 = vld [vmem:[%s3 + $0x3c] sm:$0xf]
        %v396 = vld [vmem:[%s3 + $0x40] sm:$0xf]
        %v397 = vld [vmem:[%s3 + $0x44] sm:$0xf]
        %v398 = vld [vmem:[%s3 + $0x48] sm:$0xf]
        %v399 = vld [vmem:[%s3 + $0x4c] sm:$0xf]
        %v400 = vld [vmem:[%s3 + $0x50] sm:$0xf]
        %v401 = vld [vmem:[%s3 + $0x54] sm:$0xf]
        %v402 = vld [vmem:[%s3 + $0x58] sm:$0xf]
        %v403 = vld [vmem:[%s3 + $0x5c] sm:$0xf]
        %v404 = vld [vmem:[%s3 + $0x60] sm:$0xf]
        %v405 = vld [vmem:[%s3 + $0x64] sm:$0xf]
        %v406 = vld [vmem:[%s3 + $0x68] sm:$0xf]
        %v407 = vld [vmem:[%s3 + $0x6c] sm:$0xf]
        %v408 = vld [vmem:[%s3 + $0x70] sm:$0xf]
        %v409 = vld [vmem:[%s3 + $0x74] sm:$0xf]
        %v410 = vld [vmem:[%s3 + $0x78] sm:$0xf]
        %v411 = vld [vmem:[%s3 + $0x7c] sm:$0xf]
        %v416 = vunpack.c.l.b16 %v376
        %v417 = vunpack.c.h.b16 %v376
        %v418 = vunpack.c.l.b16 %v377
        %v419 = vunpack.c.h.b16 %v377
        %v420 = vunpack.c.l.b16 %v378
        %v421 = vunpack.c.h.b16 %v378
        %v422 = vunpack.c.l.b16 %v379
        %v423 = vunpack.c.h.b16 %v379
        %v424 = vpack.c.b16 %v418, %v416
        %v425 = vpack.c.b16 %v419, %v417
        %v426 = vpack.c.b16 %v422, %v420
        %v427 = vpack.c.b16 %v423, %v421
        %v464 = vunpack.c.l.b16 %v380
        %v465 = vunpack.c.l.b16 %v381
        %v466 = vunpack.c.l.b16 %v382
        %v467 = vunpack.c.l.b16 %v383
        %v468 = vunpack.c.l.b16 %v384
        %v469 = vunpack.c.l.b16 %v385
        %v470 = vunpack.c.l.b16 %v386
        %v471 = vunpack.c.l.b16 %v387
        %v472 = vunpack.c.l.b16 %v388
        %v473 = vunpack.c.l.b16 %v389
        %v474 = vunpack.c.l.b16 %v390
        %v475 = vunpack.c.l.b16 %v391
        %v476 = vunpack.c.l.b16 %v392
        %v477 = vunpack.c.l.b16 %v393
        %v478 = vunpack.c.l.b16 %v394
        %v479 = vunpack.c.l.b16 %v395
        %v480 = vunpack.c.l.b16 %v396
        %v481 = vunpack.c.l.b16 %v397
        %v482 = vunpack.c.l.b16 %v398
        %v483 = vunpack.c.l.b16 %v399
        %v484 = vunpack.c.l.b16 %v400
        %v485 = vunpack.c.l.b16 %v401
        %v486 = vunpack.c.l.b16 %v402
        %v487 = vunpack.c.l.b16 %v403
        %v488 = vunpack.c.l.b16 %v404
        %v489 = vunpack.c.l.b16 %v405
        %v490 = vunpack.c.l.b16 %v406
        %v491 = vunpack.c.l.b16 %v407
        %v492 = vunpack.c.l.b16 %v408
        %v493 = vunpack.c.l.b16 %v409
        %v494 = vunpack.c.l.b16 %v410
        %v495 = vunpack.c.l.b16 %v411
        %v496 = vpack.c.b16 %v465, %v464
        %v497 = vpack.c.b16 %v467, %v466
        %v498 = vpack.c.b16 %v469, %v468
        %v499 = vpack.c.b16 %v471, %v470
        %v500 = vpack.c.b16 %v473, %v472
        %v501 = vpack.c.b16 %v475, %v474
        %v502 = vpack.c.b16 %v477, %v476
        %v503 = vpack.c.b16 %v479, %v478
        %v504 = vpack.c.b16 %v481, %v480
        %v505 = vpack.c.b16 %v483, %v482
        %v506 = vpack.c.b16 %v485, %v484
        %v507 = vpack.c.b16 %v487, %v486
        %v508 = vpack.c.b16 %v489, %v488
        %v509 = vpack.c.b16 %v491, %v490
        %v510 = vpack.c.b16 %v493, %v492
        %v511 = vpack.c.b16 %v495, %v494
        %528 = vmatpush.bf16.msra.mxu0 %v503
        %529 = vmatpush.bf16.msra.mxu0 %v502
        %530 = vmatpush.bf16.msra.mxu0 %v501
        %531 = vmatpush.bf16.msra.mxu0 %v500
        %532 = vmatpush.bf16.msra.mxu0 %v499
        %533 = vmatpush.bf16.msra.mxu0 %v498
        %534 = vmatpush.bf16.msra.mxu0 %v497
        %535 = vmatpush.bf16.msra.mxu0 %v496
        %536 = vmatmul.bf16.gmra.mxu0 %v424
        %v537 = vpop.f32.mrf.mxu0
        %v538 = vadd.f32 0.0, %v537
        %v539 = vpop.f32.mrf.mxu0
        %v540 = vadd.f32 0.0, %v539
        %541 = vmatmul.bf16.gmra.mxu0 %v426
        %v542 = vpop.f32.mrf.mxu0
        %v543 = vadd.f32 0.0, %v542
        %v544 = vpop.f32.mrf.mxu0
        %v545 = vadd.f32 0.0, %v544
        %546 = vdwg.mxu0
        %547 = vmatpush.bf16.msra.mxu0 %v511
        %548 = vmatpush.bf16.msra.mxu0 %v510
        %549 = vmatpush.bf16.msra.mxu0 %v509
        %550 = vmatpush.bf16.msra.mxu0 %v508
        %551 = vmatpush.bf16.msra.mxu0 %v507
        %552 = vmatpush.bf16.msra.mxu0 %v506
        %553 = vmatpush.bf16.msra.mxu0 %v505
        %554 = vmatpush.bf16.msra.mxu0 %v504
        %555 = vmatmul.bf16.gmra.mxu0 %v425
        %v556 = vpop.f32.mrf.mxu0
        %v557 = vadd.f32 %v538, %v556
        %v558 = vpop.f32.mrf.mxu0
        %v559 = vadd.f32 %v540, %v558
        %560 = vmatmul.bf16.gmra.mxu0 %v427
        %v561 = vpop.f32.mrf.mxu0
        %v562 = vadd.f32 %v543, %v561
        %v563 = vpop.f32.mrf.mxu0
        %v564 = vadd.f32 %v545, %v563
        %565 = vdwg.mxu0
        %v566 = vld [vmem:[%s4] sm:$0x1]
        %v567 = vld [vmem:[%s5] sm:$0x1]
        %569 = vrot.lane.b32.xlu0 %v373, 120
        %v570 = vpop.permute.xlu0 %569
        %572 = vrot.lane.b32.xlu0 %v373, 112
        %v573 = vpop.permute.xlu0 %572
        %575 = vrot.lane.b32.xlu0 %v373, 104
        %v576 = vpop.permute.xlu0 %575
        %578 = vrot.lane.b32.xlu0 %v373, 96
        %v579 = vpop.permute.xlu0 %578
        %581 = vrot.lane.b32.xlu0 %v373, 88
        %v582 = vpop.permute.xlu0 %581
        %584 = vrot.lane.b32.xlu0 %v373, 80
        %v585 = vpop.permute.xlu0 %584
        %587 = vrot.lane.b32.xlu0 %v373, 72
        %v588 = vpop.permute.xlu0 %587
        %590 = vrot.lane.b32.xlu0 %v373, 64
        %v591 = vpop.permute.xlu0 %590
        %593 = vrot.lane.b32.xlu0 %v373, 56
        %v594 = vpop.permute.xlu0 %593
        %596 = vrot.lane.b32.xlu0 %v373, 48
        %v597 = vpop.permute.xlu0 %596
        %599 = vrot.lane.b32.xlu0 %v373, 40
        %v600 = vpop.permute.xlu0 %599
        %602 = vrot.lane.b32.xlu0 %v373, 32
        %v603 = vpop.permute.xlu0 %602
        %605 = vrot.lane.b32.xlu0 %v373, 24
        %v606 = vpop.permute.xlu0 %605
        %608 = vrot.lane.b32.xlu0 %v373, 16
        %v609 = vpop.permute.xlu0 %608
        %611 = vrot.lane.b32.xlu0 %v373, 8
        %v612 = vpop.permute.xlu0 %611
        %v614 = vrot.slane %v573, 4
        %vm615 = vcmask 1047556
        %v616 = vsel %vm615, %v614, %v373
        %v618 = vunpack.c.l.s4 1983009808
        %v619 = vunpack.c.0.s8 %v618
        %v620 = vperm.slane %v616, %v619
        %v621 = vrot.slane %v576, 4
        %v622 = vsel %vm615, %v621, %v570
        %v624 = vunpack.c.l.s4 1983009808
        %v625 = vunpack.c.0.s8 %v624
        %v626 = vperm.slane %v622, %v625
        %v627 = vrot.slane %v585, 4
        %v628 = vsel %vm615, %v627, %v579
        %v630 = vunpack.c.l.s4 1983009808
        %v631 = vunpack.c.0.s8 %v630
        %v632 = vperm.slane %v628, %v631
        %v633 = vrot.slane %v588, 4
        %v634 = vsel %vm615, %v633, %v582
        %v636 = vunpack.c.l.s4 1983009808
        %v637 = vunpack.c.0.s8 %v636
        %v638 = vperm.slane %v634, %v637
        %v639 = vrot.slane %v626, 4
        %v640 = vsel %vm615, %v639, %v620
        %v642 = vunpack.c.l.s4 1934713408
        %v643 = vunpack.c.0.s8 %v642
        %v644 = vperm.slane %v640, %v643
        %v645 = vrot.slane %v638, 4
        %v646 = vsel %vm615, %v645, %v632
        %v648 = vunpack.c.l.s4 1934713408
        %v649 = vunpack.c.0.s8 %v648
        %v650 = vperm.slane %v646, %v649
        %v651 = vrot.slane %v650, 4
        %v652 = vsel %vm615, %v651, %v644
        %v653 = vrot.slane %v644, 4
        %v654 = vsel %vm615, %v650, %v653
        %v655 = vrot.slane %v597, 4
        %v656 = vsel %vm615, %v655, %v591
        %v658 = vunpack.c.l.s4 1983009808
        %v659 = vunpack.c.0.s8 %v658
        %v660 = vperm.slane %v656, %v659
        %v661 = vrot.slane %v600, 4
        %v662 = vsel %vm615, %v661, %v594
        %v664 = vunpack.c.l.s4 1983009808
        %v665 = vunpack.c.0.s8 %v664
        %v666 = vperm.slane %v662, %v665
        %v667 = vrot.slane %v609, 4
        %v668 = vsel %vm615, %v667, %v603
        %v670 = vunpack.c.l.s4 1983009808
        %v671 = vunpack.c.0.s8 %v670
        %v672 = vperm.slane %v668, %v671
        %v673 = vrot.slane %v612, 4
        %v674 = vsel %vm615, %v673, %v606
        %v676 = vunpack.c.l.s4 1983009808
        %v677 = vunpack.c.0.s8 %v676
        %v678 = vperm.slane %v674, %v677
        %v679 = vrot.slane %v666, 4
        %v680 = vsel %vm615, %v679, %v660
        %v682 = vunpack.c.l.s4 1934713408
        %v683 = vunpack.c.0.s8 %v682
        %v684 = vperm.slane %v680, %v683
        %v685 = vrot.slane %v678, 4
        %v686 = vsel %vm615, %v685, %v672
        %v688 = vunpack.c.l.s4 1934713408
        %v689 = vunpack.c.0.s8 %v688
        %v690 = vperm.slane %v686, %v689
        %v691 = vrot.slane %v690, 4
        %v692 = vsel %vm615, %v691, %v684
        %v693 = vrot.slane %v684, 4
        %v694 = vsel %vm615, %v690, %v693
        %v696 = vperm.slane %v566, 0
        %v698 = vmul.f32 %v652, %v696
        %v699 = vmul.f32 %v692, %v696
        %v700 = vmul.f32 %v654, %v696
        %v701 = vmul.f32 %v694, %v696
        %v702 = vadd.f32 %v698, %v557
        %v703 = vadd.f32 %v699, %v559
        %v704 = vadd.f32 %v700, %v562
        %v705 = vadd.f32 %v701, %v564
        %v707 = vperm.slane %v567, 0
        %v709 = vadd.f32 %v702, %v707
        %v710 = vadd.f32 %v703, %v707
        %v711 = vadd.f32 %v704, %v707
        %v712 = vadd.f32 %v705, %v707
        %v713 = vrot.slane %v709, 4
        %v714 = vsel %vm615, 0.0, %v713
        %v716 = vunpack.c.l.s4 1983009808
        %v717 = vunpack.c.0.s8 %v716
        %v718 = vperm.slane %v709, %v717
        %v720 = vunpack.c.l.s4 1983009808
        %v721 = vunpack.c.0.s8 %v720
        %v722 = vperm.slane %v714, %v721
        %v723 = vrot.slane %v711, 4
        %v724 = vsel %vm615, 0.0, %v723
        %v726 = vunpack.c.l.s4 1983009808
        %v727 = vunpack.c.0.s8 %v726
        %v728 = vperm.slane %v711, %v727
        %v730 = vunpack.c.l.s4 1983009808
        %v731 = vunpack.c.0.s8 %v730
        %v732 = vperm.slane %v724, %v731
        %v733 = vrot.slane %v728, 4
        %v734 = vsel %vm615, %v733, %v718
        %v735 = vrot.slane %v718, 4
        %v736 = vsel %vm615, %v728, %v735
        %v738 = vunpack.c.l.s4 1934713408
        %v739 = vunpack.c.0.s8 %v738
        %v740 = vperm.slane %v734, %v739
        %v742 = vunpack.c.l.s4 1934713408
        %v743 = vunpack.c.0.s8 %v742
        %v744 = vperm.slane %v736, %v743
        %v745 = vrot.slane %v732, 4
        %v746 = vsel %vm615, %v745, %v722
        %v747 = vrot.slane %v722, 4
        %v748 = vsel %vm615, %v732, %v747
        %v750 = vunpack.c.l.s4 1934713408
        %v751 = vunpack.c.0.s8 %v750
        %v752 = vperm.slane %v746, %v751
        %v754 = vunpack.c.l.s4 1934713408
        %v755 = vunpack.c.0.s8 %v754
        %v756 = vperm.slane %v748, %v755
        %v757 = vrot.slane %v740, 4
        %v758 = vsel %vm615, 0.0, %v757
        %v759 = vrot.slane %v744, 4
        %v760 = vsel %vm615, 0.0, %v759
        %v761 = vrot.slane %v752, 4
        %v762 = vsel %vm615, 0.0, %v761
        %v763 = vrot.slane %v756, 4
        %v764 = vsel %vm615, 0.0, %v763
        %v765 = vrot.slane %v710, 4
        %v766 = vsel %vm615, 0.0, %v765
        %v768 = vunpack.c.l.s4 1983009808
        %v769 = vunpack.c.0.s8 %v768
        %v770 = vperm.slane %v710, %v769
        %v772 = vunpack.c.l.s4 1983009808
        %v773 = vunpack.c.0.s8 %v772
        %v774 = vperm.slane %v766, %v773
        %v775 = vrot.slane %v712, 4
        %v776 = vsel %vm615, 0.0, %v775
        %v778 = vunpack.c.l.s4 1983009808
        %v779 = vunpack.c.0.s8 %v778
        %v780 = vperm.slane %v712, %v779
        %v782 = vunpack.c.l.s4 1983009808
        %v783 = vunpack.c.0.s8 %v782
        %v784 = vperm.slane %v776, %v783
        %v785 = vrot.slane %v780, 4
        %v786 = vsel %vm615, %v785, %v770
        %v787 = vrot.slane %v770, 4
        %v788 = vsel %vm615, %v780, %v787
        %v790 = vunpack.c.l.s4 1934713408
        %v791 = vunpack.c.0.s8 %v790
        %v792 = vperm.slane %v786, %v791
        %v794 = vunpack.c.l.s4 1934713408
        %v795 = vunpack.c.0.s8 %v794
        %v796 = vperm.slane %v788, %v795
        %v797 = vrot.slane %v784, 4
        %v798 = vsel %vm615, %v797, %v774
        %v799 = vrot.slane %v774, 4
        %v800 = vsel %vm615, %v784, %v799
        %v802 = vunpack.c.l.s4 1934713408
        %v803 = vunpack.c.0.s8 %v802
        %v804 = vperm.slane %v798, %v803
        %v806 = vunpack.c.l.s4 1934713408
        %v807 = vunpack.c.0.s8 %v806
        %v808 = vperm.slane %v800, %v807
        %v809 = vrot.slane %v792, 4
        %v810 = vsel %vm615, 0.0, %v809
        %v811 = vrot.slane %v796, 4
        %v812 = vsel %vm615, 0.0, %v811
        %v813 = vrot.slane %v804, 4
        %v814 = vsel %vm615, 0.0, %v813
        %v815 = vrot.slane %v808, 4
        %v816 = vsel %vm615, 0.0, %v815
        %818 = vrot.lane.b32.xlu0 %v758, 8
        %v819 = vpop.permute.xlu0 %818
        %822 = vrot.lane.b32.xlu0 %v744, 16
        %v823 = vpop.permute.xlu0 %822
        %826 = vrot.lane.b32.xlu0 %v760, 24
        %v827 = vpop.permute.xlu0 %826
        %830 = vrot.lane.b32.xlu0 %v752, 32
        %v831 = vpop.permute.xlu0 %830
        %834 = vrot.lane.b32.xlu0 %v762, 40
        %v835 = vpop.permute.xlu0 %834
        %838 = vrot.lane.b32.xlu0 %v756, 48
        %v839 = vpop.permute.xlu0 %838
        %842 = vrot.lane.b32.xlu0 %v764, 56
        %v843 = vpop.permute.xlu0 %842
        %846 = vrot.lane.b32.xlu0 %v792, 64
        %v847 = vpop.permute.xlu0 %846
        %850 = vrot.lane.b32.xlu0 %v810, 72
        %v851 = vpop.permute.xlu0 %850
        %854 = vrot.lane.b32.xlu0 %v796, 80
        %v855 = vpop.permute.xlu0 %854
        %858 = vrot.lane.b32.xlu0 %v812, 88
        %v859 = vpop.permute.xlu0 %858
        %862 = vrot.lane.b32.xlu0 %v804, 96
        %v863 = vpop.permute.xlu0 %862
        %866 = vrot.lane.b32.xlu0 %v814, 104
        %v867 = vpop.permute.xlu0 %866
        %870 = vrot.lane.b32.xlu0 %v808, 112
        %v871 = vpop.permute.xlu0 %870
        %874 = vrot.lane.b32.xlu0 %v816, 120
        %v875 = vpop.permute.xlu0 %874
        %vm877 = vcmask 64512
        %v878 = vsel %vm877, %v740, %v819
        %vm879 = vcmask 130048
        %v880 = vsel %vm879, %v878, %v823
        %vm881 = vcmask 195584
        %v882 = vsel %vm881, %v880, %v827
        %v883 = vsel %vm359, %v882, %v831
        %vm884 = vcmask 326656
        %v885 = vsel %vm884, %v883, %v835
        %vm886 = vcmask 392192
        %v887 = vsel %vm886, %v885, %v839
        %vm888 = vcmask 457728
        %v889 = vsel %vm888, %v887, %v843
        %vm890 = vcmask 523264
        %v891 = vsel %vm890, %v889, %v847
        %vm892 = vcmask 588800
        %v893 = vsel %vm892, %v891, %v851
        %vm894 = vcmask 654336
        %v895 = vsel %vm894, %v893, %v855
        %vm896 = vcmask 719872
        %v897 = vsel %vm896, %v895, %v859
        %vm898 = vcmask 785408
        %v899 = vsel %vm898, %v897, %v863
        %vm900 = vcmask 850944
        %v901 = vsel %vm900, %v899, %v867
        %vm902 = vcmask 916480
        %v903 = vsel %vm902, %v901, %v871
        %vm904 = vcmask 982016
        %v905 = vsel %vm904, %v903, %v875
        %906 = vst [vmem:[%s339] sm:$0x3] %v905
        %s907 = sand.u32 %s167, 1
        %s908 = scalar_lea.sflag [#allocation4], %s907
        %s909 = sand.u32 %s167, 1
        %s910 = smul.addr %s909, 2
        %s911 = scalar_lea.vmem [#allocation6], %s910
        // Predicated region
        $region87: #{tpu_custom_call.1} parent=77 // pred_check
          %p912 = pneg %p177
        $region88: #{tpu_custom_call.1} parent=77 // pred_check_branch
          %914 = sbr.rel (%p912) target = $region90
        $region89: #{tpu_custom_call.1} parent=77 // pred_region
          %916 = vsyncadd %s908, 0
          %s917 = smul.addr %s23, 2
          %s918 = scalar_lea.hbm %s6, %s917
          %s920 = sshll.u32 %s911, 4
          %s921 = int_to_ptr.vmem [resolvable:$true] %s920
          %s922 = sshll.u32 %s918, 4
          %s923 = int_to_ptr.hbm [resolvable:$true] %s922
          %925 = dma.vmem_to_hbm [thread:$0]  %s921, 32, %s923, %s908
        $region90: #{tpu_custom_call.1} parent=77 // pred_fallthru
          _
      $region78: #{tpu_custom_call.1} parent=5 // pred_fallthru
        _
      %p926 = scmp.le.s32.totalorder 2, %s18
      // Predicated region
      $region91: #{tpu_custom_call.1} parent=5 // pred_check
        %p927 = pneg %p926
      $region92: #{tpu_custom_call.1} parent=5 // pred_check_branch
        %929 = sbr.rel (%p927) target = $region94
      $region93: #{tpu_custom_call.1} parent=5 // pred_region
        %s930 = ssub.s32 %s18, 2
        // Predicated region
        $region95: #{tpu_custom_call.1} parent=93 // pred_check
          %p931 = pneg %p183
        $region96: #{tpu_custom_call.1} parent=93 // pred_check_branch
          %933 = sbr.rel (%p931) target = $region98
        $region97: #{tpu_custom_call.1} parent=93 // pred_region
          %s934 = sand.u32 %s168, 1
          %s935 = scalar_lea.sflag [#allocation4], %s934
          %s936 = sand.u32 %s168, 1
          %s937 = smul.addr %s936, 2
          %s938 = scalar_lea.vmem [#allocation6], %s937
          %940 = dma.done %s935, 32
        $region98: #{tpu_custom_call.1} parent=93 // pred_fallthru
          _
      $region94: #{tpu_custom_call.1} parent=5 // pred_fallthru
        _
    $region6: #{tpu_custom_call.1} parent=1 // loop_footer
      %s22 = sadd.s32 1, %s18
    $region7: #{tpu_custom_call.1} parent=1 // loop_footer_branch
      %17 = sbr.rel target = $region3
    $region8: #{tpu_custom_call.1} parent=1 // loop_exit
      _
    %941 = vsyncpa [#allocation3], 1
    %s942 = scalar_lea.sflag [#allocation3], 1
    %943 = vsyncpa %s942, 1
    %944 = vsyncpa [#allocation4], 1
    %s945 = scalar_lea.sflag [#allocation4], 1
    %946 = vsyncpa %s945, 1

</llo_original>
